<compile_context>
chip_gen: v5e
topology: v5e:2x2
jax: 0.10.0
libtpu: 0.0.40
codegen_flags: <defaults>
</compile_context>

<pallas_src>
import functools

import jax
import jax.numpy as jnp
from jax.experimental import pallas as pl
from jax.experimental.pallas import tpu as pltpu


# ----------------------------------------------------------------------------
# Fused kernel: trajectory L2 + weighted cross-entropy
# ----------------------------------------------------------------------------
def _multitask_kernel(pred_ref, gt_ref, logits_ref, labels_ref, freq_ref,
                      drv_ref, cls_ref, tot_ref, acc_ref,
                      *, n_frames, a_drv, a_cls):
    step = pl.program_id(0)
    tn = logits_ref.shape[0]          # frames per block
    n_classes = logits_ref.shape[1]
    n_points = pred_ref.shape[2]

    @pl.when(step == 0)
    def _init():
        acc_ref[0] = jnp.float32(0.0)   # sum of per-point L2 distances
        acc_ref[1] = jnp.float32(0.0)   # sum w[y_i] * ce_i
        acc_ref[2] = jnp.float32(0.0)   # sum w[y_i]

    # Valid-row mask (handles the padded tail block when N % TN != 0).
    row = step * tn + jax.lax.broadcasted_iota(jnp.int32, (tn, 1), 0)
    valid = row < n_frames                                   # (tn, 1)

    # ---- trajectory L2 (x / y planes, pure VPU elementwise) ------------------
    px = pred_ref[0].astype(jnp.float32)                     # (tn, P)
    py = pred_ref[1].astype(jnp.float32)
    gx = gt_ref[0].astype(jnp.float32)
    gy = gt_ref[1].astype(jnp.float32)
    dx = px - gx
    dy = py - gy
    dist = jnp.sqrt(dx * dx + dy * dy)                       # (tn, P)
    dist = jnp.where(valid, dist, 0.0)
    traj_partial = jnp.sum(dist)

    # ---- weighted cross-entropy (in-kernel one-hot, keepdims throughout) -----
    logits = logits_ref[...].astype(jnp.float32)             # (tn, C)
    labels = labels_ref[...]                                 # (tn, 1) int32
    onehot = (jax.lax.broadcasted_iota(jnp.int32, (tn, n_classes), 1)
              == labels).astype(jnp.float32)                 # (tn, C)
    m = jnp.max(logits, axis=-1, keepdims=True)              # (tn, 1)
    lse = m + jnp.log(jnp.sum(jnp.exp(logits - m), axis=-1, keepdims=True))
    tgt = jnp.sum(onehot * logits, axis=-1, keepdims=True)   # (tn, 1)
    ce = lse - tgt                                           # (tn, 1)
    w = pl.reciprocal(freq_ref[...].astype(jnp.float32))     # (1, C) = 1/freq
    w_row = jnp.sum(onehot * w, axis=-1, keepdims=True)      # (tn, 1)
    ce = jnp.where(valid, ce, 0.0)
    w_row = jnp.where(valid, w_row, 0.0)
    num_partial = jnp.sum(w_row * ce)
    den_partial = jnp.sum(w_row)

    acc_ref[0] += traj_partial
    acc_ref[1] += num_partial
    acc_ref[2] += den_partial

    @pl.when(step == pl.num_programs(0) - 1)
    def _finalize():
        inv_np = 1.0 / float(n_frames * n_points)            # compile-time const
        loss_drv = acc_ref[0] * inv_np
        loss_cls = acc_ref[1] / acc_ref[2]
        drv_ref[0, 0] = loss_drv
        cls_ref[0, 0] = loss_cls
        tot_ref[0, 0] = a_drv * loss_drv + a_cls * loss_cls


def _round_up(x, m):
    return ((x + m - 1) // m) * m


def multitask_hdd_losses(pred_xy, gt_xy, logits, labels, class_freq,
                         a_drv, a_cls):
    """pred_xy/gt_xy: (N, P, 2); logits: (N, C); labels: (N,); class_freq: (C,)."""
    n, p, _ = pred_xy.shape
    c = logits.shape[-1]

    # Layout plumbing (wrapper side): xy on a leading axis -> lane-dense (., P).
    pred = jnp.moveaxis(pred_xy, -1, 0)                      # (2, N, P)
    gt = jnp.moveaxis(gt_xy, -1, 0)                          # (2, N, P)
    labels2 = labels.astype(jnp.int32).reshape(n, 1)         # (N, 1)
    freq = class_freq.astype(jnp.float32).reshape(1, c)      # (1, C)

    tn = min(512, _round_up(n, 8))                           # frames per block
    grid = (pl.cdiv(n, tn),)

    kernel = functools.partial(_multitask_kernel, n_frames=n,
                               a_drv=float(a_drv), a_cls=float(a_cls))
    smem_scalar = pl.BlockSpec((1, 1), lambda i: (0, 0), memory_space=pltpu.SMEM)

    drv, cls, tot = pl.pallas_call(
        kernel,
        out_shape=(
            jax.ShapeDtypeStruct((1, 1), jnp.float32),
            jax.ShapeDtypeStruct((1, 1), jnp.float32),
            jax.ShapeDtypeStruct((1, 1), jnp.float32),
        ),
        grid_spec=pltpu.PrefetchScalarGridSpec(
            num_scalar_prefetch=0,
            grid=grid,
            in_specs=[
                pl.BlockSpec((2, tn, p), lambda i: (0, i, 0)),   # pred (2,N,P)
                pl.BlockSpec((2, tn, p), lambda i: (0, i, 0)),   # gt   (2,N,P)
                pl.BlockSpec((tn, c), lambda i: (i, 0)),         # logits
                pl.BlockSpec((tn, 1), lambda i: (i, 0)),         # labels
                pl.BlockSpec((1, c), lambda i: (0, 0)),          # class_freq
            ],
            out_specs=(smem_scalar, smem_scalar, smem_scalar),
            scratch_shapes=[pltpu.SMEM((3,), jnp.float32)],
        ),
        compiler_params=pltpu.CompilerParams(
            dimension_semantics=("arbitrary",)),
    )(pred, gt, logits, labels2, freq)
    return drv[0, 0], cls[0, 0], tot[0, 0]


# ----------------------------------------------------------------------------
# MultiTaskHDD.forward equivalent
# ----------------------------------------------------------------------------
def multitask_hdd_forward(net_out, batch, class_freq, alpha_dict=None):
    alpha_dict = alpha_dict or {}
    r_prev = batch['r_prev_xy']
    r_next = batch['r_next_xy']
    # Mirrors: if batch['r_prev_xy'].dim() == 4: view(bsize*win, -1, 2)
    if r_prev.ndim == 4:
        bsize, win = r_prev.shape[0], r_prev.shape[1]
        r_prev = r_prev.reshape(bsize * win, -1, 2)
        r_next = r_next.reshape(bsize * win, -1, 2)

    if not alpha_dict:
        a_drv, a_cls = 1.0, 1.0
    else:
        a_drv = float(alpha_dict.get('loss_driving', 0.0))
        a_cls = float(alpha_dict.get('loss_classif', 0.0))

    loss_drv, loss_cls, loss_tot = multitask_hdd_losses(
        net_out['pred_xy'], r_next, net_out['classif_logits'],
        batch['label'], class_freq, a_drv, a_cls)

    return {'loss_driving': loss_drv, 'loss_classif': loss_cls,
            'loss': loss_tot}


if __name__ == "__main__":
    key = jax.random.PRNGKey(0)
    k1, k2, k3, k4 = jax.random.split(key, 4)

    bsize, win = 2, 4          # -> N = 8 frames
    n_points = 8               # future trajectory points per frame
    n_classes = 4              # HDD-style event classes (small synthetic)
    N = bsize * win

    # batch tensors (4-D trajectory tensors trigger the reshape branch)
    batch = {
        'r_prev_xy': jax.random.normal(k1, (bsize, win, n_points, 2), jnp.float32),
        'r_next_xy': jax.random.normal(k2, (bsize, win, n_points, 2), jnp.float32),
        'label': jax.random.randint(k3, (N,), 0, n_classes, jnp.int32),
    }

    # network outputs
    net_out = {
        'pred_xy': jax.random.normal(k4, (N, n_points, 2), jnp.float32),
        'classif_logits': jax.random.normal(
            jax.random.fold_in(key, 7), (N, n_classes), jnp.float32),
    }

    # deterministic class frequencies (no checkpoint load)
    class_freq = jnp.array([0.4, 0.3, 0.2, 0.1], dtype=jnp.float32)

    out = multitask_hdd_forward(net_out, batch, class_freq, alpha_dict={})
    jax.block_until_ready(out['loss'])

    # Pure-JAX reference check.
    gt = batch['r_next_xy'].reshape(N, n_points, 2)
    ref_drv = jnp.mean(jnp.sqrt(jnp.sum(
        (net_out['pred_xy'] - gt) ** 2, axis=-1)))
    logits = net_out['classif_logits']
    labels = batch['label']
    w = 1.0 / class_freq
    lse = jax.nn.logsumexp(logits, axis=-1)
    tgt = jnp.take_along_axis(logits, labels[:, None], axis=-1)[:, 0]
    wr = w[labels]
    ref_cls = jnp.sum(wr * (lse - tgt)) / jnp.sum(wr)

    assert jnp.allclose(out['loss_driving'], ref_drv, rtol=1e-5, atol=1e-5)
    assert jnp.allclose(out['loss_classif'], ref_cls, rtol=1e-5, atol=1e-5)
    assert jnp.allclose(out['loss'], ref_drv + ref_cls, rtol=1e-5, atol=1e-5)

    print("KERNEL_OK")
</pallas_src>

<mosaic_0001>
module attributes {stable_mosaic.version = 11 : i64} {
  func.func @_multitask_kernel(%arg0: i32, %arg1: memref<2x8x8xf32, #tpu.memory_space<vmem>>, %arg2: memref<2x8x8xf32, #tpu.memory_space<vmem>>, %arg3: memref<8x4xf32, #tpu.memory_space<vmem>>, %arg4: memref<8x1xi32, #tpu.memory_space<vmem>>, %arg5: memref<1x4xf32, #tpu.memory_space<vmem>>, %arg6: memref<1x1xf32, #tpu.memory_space<smem>>, %arg7: memref<1x1xf32, #tpu.memory_space<smem>>, %arg8: memref<1x1xf32, #tpu.memory_space<smem>>, %arg9: memref<3xf32, #tpu.memory_space<smem>>) attributes {dimension_semantics = [#tpu.dimension_semantics<arbitrary>], iteration_bounds = array<i64: 1>, scalar_prefetch = 0 : i64, scratch_operands = 1 : i64, tpu.core_type = #tpu.core_type<tc>, window_params = [{transform_indices = @transform_0, window_bounds = array<i64: 2, 8, 8>}, {transform_indices = @transform_1, window_bounds = array<i64: 2, 8, 8>}, {transform_indices = @transform_2, window_bounds = array<i64: 8, 4>}, {transform_indices = @transform_3, window_bounds = array<i64: 8, 1>}, {pipeline_mode = #tpu.pipeline_mode<synchronous>, transform_indices = @transform_4, window_bounds = array<i64: 1, 4>}, {transform_indices = @transform_5, window_bounds = array<i64: 1, 1>}, {transform_indices = @transform_6, window_bounds = array<i64: 1, 1>}, {transform_indices = @transform_7, window_bounds = array<i64: 1, 1>}]} {
    %c0_i32 = arith.constant 0 : i32
    %0 = arith.cmpi eq, %arg0, %c0_i32 : i32
    %1 = arith.extui %0 : i1 to i32
    %c0_i32_0 = arith.constant 0 : i32
    %2 = arith.cmpi ne, %1, %c0_i32_0 : i32
    scf.if %2 {
      %cst_34 = arith.constant 0.000000e+00 : f32
      %c0_35 = arith.constant 0 : index
      %82 = memref.load %arg9[%c0_35] : memref<3xf32, #tpu.memory_space<smem>>
      memref.store %cst_34, %arg9[%c0_35] : memref<3xf32, #tpu.memory_space<smem>>
      %cst_36 = arith.constant 0.000000e+00 : f32
      %c1_37 = arith.constant 1 : index
      %83 = memref.load %arg9[%c1_37] : memref<3xf32, #tpu.memory_space<smem>>
      memref.store %cst_36, %arg9[%c1_37] : memref<3xf32, #tpu.memory_space<smem>>
      %cst_38 = arith.constant 0.000000e+00 : f32
      %c2_39 = arith.constant 2 : index
      %84 = memref.load %arg9[%c2_39] : memref<3xf32, #tpu.memory_space<smem>>
      memref.store %cst_38, %arg9[%c2_39] : memref<3xf32, #tpu.memory_space<smem>>
    } else {
    }
    %c8_i32 = arith.constant 8 : i32
    %3 = arith.muli %arg0, %c8_i32 : i32
    %4 = tpu.iota {dimensions = array<i32: 0>} : vector<8x1xi32>
    %5 = vector.broadcast %3 : i32 to vector<8x1xi32>
    %6 = arith.addi %5, %4 : vector<8x1xi32>
    %c8_i32_1 = arith.constant 8 : i32
    %7 = vector.broadcast %c8_i32_1 : i32 to vector<8x1xi32>
    %8 = arith.cmpi slt, %6, %7 : vector<8x1xi32>
    %c0 = arith.constant 0 : index
    %c0_2 = arith.constant 0 : index
    %c0_3 = arith.constant 0 : index
    %9 = vector.load %arg1[%c0, %c0_2, %c0_3] : memref<2x8x8xf32, #tpu.memory_space<vmem>>, vector<1x8x8xf32>
    %10 = vector.shape_cast %9 : vector<1x8x8xf32> to vector<8x8xf32>
    %c1 = arith.constant 1 : index
    %c0_4 = arith.constant 0 : index
    %c0_5 = arith.constant 0 : index
    %11 = vector.load %arg1[%c1, %c0_4, %c0_5] : memref<2x8x8xf32, #tpu.memory_space<vmem>>, vector<1x8x8xf32>
    %12 = vector.shape_cast %11 : vector<1x8x8xf32> to vector<8x8xf32>
    %c0_6 = arith.constant 0 : index
    %c0_7 = arith.constant 0 : index
    %c0_8 = arith.constant 0 : index
    %13 = vector.load %arg2[%c0_6, %c0_7, %c0_8] : memref<2x8x8xf32, #tpu.memory_space<vmem>>, vector<1x8x8xf32>
    %14 = vector.shape_cast %13 : vector<1x8x8xf32> to vector<8x8xf32>
    %c1_9 = arith.constant 1 : index
    %c0_10 = arith.constant 0 : index
    %c0_11 = arith.constant 0 : index
    %15 = vector.load %arg2[%c1_9, %c0_10, %c0_11] : memref<2x8x8xf32, #tpu.memory_space<vmem>>, vector<1x8x8xf32>
    %16 = vector.shape_cast %15 : vector<1x8x8xf32> to vector<8x8xf32>
    %17 = arith.subf %10, %14 : vector<8x8xf32>
    %18 = arith.subf %12, %16 : vector<8x8xf32>
    %19 = arith.mulf %17, %17 : vector<8x8xf32>
    %20 = arith.mulf %18, %18 : vector<8x8xf32>
    %21 = arith.addf %19, %20 : vector<8x8xf32>
    %22 = math.sqrt %21 : vector<8x8xf32>
    %cst = arith.constant 0.000000e+00 : f32
    %23 = vector.shape_cast %8 : vector<8x1xi1> to vector<8x1xi1>
    %24 = vector.broadcast %23 : vector<8x1xi1> to vector<8x8xi1>
    %25 = vector.broadcast %cst : f32 to vector<8x8xf32>
    %26 = arith.select %24, %22, %25 : vector<8x8xi1>, vector<8x8xf32>
    %27 = vector.shape_cast %26 : vector<8x8xf32> to vector<1x8x8xf32>
    %cst_12 = arith.constant dense<0.000000e+00> : vector<1xf32>
    %28 = vector.multi_reduction <add>, %27, %cst_12 [1, 2] : vector<1x8x8xf32> to vector<1xf32>
    %29 = vector.shape_cast %28 : vector<1xf32> to vector<1x1x1xf32>
    %30 = vector.extract %29[0, 0, 0] : f32 from vector<1x1x1xf32>
    %c0_13 = arith.constant 0 : index
    %c0_14 = arith.constant 0 : index
    %31 = vector.load %arg3[%c0_13, %c0_14] : memref<8x4xf32, #tpu.memory_space<vmem>>, vector<8x4xf32>
    %c0_15 = arith.constant 0 : index
    %c0_16 = arith.constant 0 : index
    %32 = vector.load %arg4[%c0_15, %c0_16] : memref<8x1xi32, #tpu.memory_space<vmem>>, vector<8x1xi32>
    %33 = tpu.iota {dimensions = array<i32: 1>} : vector<8x4xi32>
    %34 = vector.broadcast %32 : vector<8x1xi32> to vector<8x4xi32>
    %35 = arith.cmpi eq, %33, %34 : vector<8x4xi32>
    %36 = arith.extui %35 : vector<8x4xi1> to vector<8x4xi32>
    %37 = arith.sitofp %36 : vector<8x4xi32> to vector<8x4xf32>
    %cst_17 = arith.constant dense<0xFF800000> : vector<8xf32>
    %38 = vector.multi_reduction <maximumf>, %31, %cst_17 [1] : vector<8x4xf32> to vector<8xf32>
    %39 = vector.shape_cast %38 : vector<8xf32> to vector<8x1xf32>
    %40 = vector.broadcast %39 : vector<8x1xf32> to vector<8x4xf32>
    %41 = arith.subf %31, %40 : vector<8x4xf32>
    %42 = math.exp %41 : vector<8x4xf32>
    %cst_18 = arith.constant dense<0.000000e+00> : vector<8xf32>
    %43 = vector.multi_reduction <add>, %42, %cst_18 [1] : vector<8x4xf32> to vector<8xf32>
    %44 = vector.shape_cast %43 : vector<8xf32> to vector<8x1xf32>
    %45 = math.log %44 : vector<8x1xf32>
    %46 = arith.addf %39, %45 : vector<8x1xf32>
    %47 = arith.mulf %37, %31 : vector<8x4xf32>
    %cst_19 = arith.constant dense<0.000000e+00> : vector<8xf32>
    %48 = vector.multi_reduction <add>, %47, %cst_19 [1] : vector<8x4xf32> to vector<8xf32>
    %49 = vector.shape_cast %48 : vector<8xf32> to vector<8x1xf32>
    %50 = arith.subf %46, %49 : vector<8x1xf32>
    %c0_20 = arith.constant 0 : index
    %c0_21 = arith.constant 0 : index
    %51 = vector.load %arg5[%c0_20, %c0_21] : memref<1x4xf32, #tpu.memory_space<vmem>>, vector<1x4xf32>
    %52 = tpu.reciprocal %51 : vector<1x4xf32> -> vector<1x4xf32>
    %53 = vector.broadcast %52 : vector<1x4xf32> to vector<8x4xf32>
    %54 = arith.mulf %37, %53 : vector<8x4xf32>
    %cst_22 = arith.constant dense<0.000000e+00> : vector<8xf32>
    %55 = vector.multi_reduction <add>, %54, %cst_22 [1] : vector<8x4xf32> to vector<8xf32>
    %56 = vector.shape_cast %55 : vector<8xf32> to vector<8x1xf32>
    %cst_23 = arith.constant 0.000000e+00 : f32
    %57 = vector.broadcast %cst_23 : f32 to vector<8x1xf32>
    %58 = arith.select %8, %50, %57 : vector<8x1xi1>, vector<8x1xf32>
    %cst_24 = arith.constant 0.000000e+00 : f32
    %59 = vector.broadcast %cst_24 : f32 to vector<8x1xf32>
    %60 = arith.select %8, %56, %59 : vector<8x1xi1>, vector<8x1xf32>
    %61 = arith.mulf %60, %58 : vector<8x1xf32>
    %62 = vector.shape_cast %61 : vector<8x1xf32> to vector<1x8x1xf32>
    %cst_25 = arith.constant dense<0.000000e+00> : vector<1xf32>
    %63 = vector.multi_reduction <add>, %62, %cst_25 [1, 2] : vector<1x8x1xf32> to vector<1xf32>
    %64 = vector.shape_cast %63 : vector<1xf32> to vector<1x1x1xf32>
    %65 = vector.extract %64[0, 0, 0] : f32 from vector<1x1x1xf32>
    %66 = vector.shape_cast %60 : vector<8x1xf32> to vector<1x8x1xf32>
    %cst_26 = arith.constant dense<0.000000e+00> : vector<1xf32>
    %67 = vector.multi_reduction <add>, %66, %cst_26 [1, 2] : vector<1x8x1xf32> to vector<1xf32>
    %68 = vector.shape_cast %67 : vector<1xf32> to vector<1x1x1xf32>
    %69 = vector.extract %68[0, 0, 0] : f32 from vector<1x1x1xf32>
    %c0_27 = arith.constant 0 : index
    %70 = memref.load %arg9[%c0_27] : memref<3xf32, #tpu.memory_space<smem>>
    %71 = arith.addf %70, %30 : f32
    %c0_28 = arith.constant 0 : index
    %72 = memref.load %arg9[%c0_28] : memref<3xf32, #tpu.memory_space<smem>>
    memref.store %71, %arg9[%c0_28] : memref<3xf32, #tpu.memory_space<smem>>
    %c1_29 = arith.constant 1 : index
    %73 = memref.load %arg9[%c1_29] : memref<3xf32, #tpu.memory_space<smem>>
    %74 = arith.addf %73, %65 : f32
    %c1_30 = arith.constant 1 : index
    %75 = memref.load %arg9[%c1_30] : memref<3xf32, #tpu.memory_space<smem>>
    memref.store %74, %arg9[%c1_30] : memref<3xf32, #tpu.memory_space<smem>>
    %c2 = arith.constant 2 : index
    %76 = memref.load %arg9[%c2] : memref<3xf32, #tpu.memory_space<smem>>
    %77 = arith.addf %76, %69 : f32
    %c2_31 = arith.constant 2 : index
    %78 = memref.load %arg9[%c2_31] : memref<3xf32, #tpu.memory_space<smem>>
    memref.store %77, %arg9[%c2_31] : memref<3xf32, #tpu.memory_space<smem>>
    %c0_i32_32 = arith.constant 0 : i32
    %79 = arith.cmpi eq, %arg0, %c0_i32_32 : i32
    %80 = arith.extui %79 : i1 to i32
    %c0_i32_33 = arith.constant 0 : i32
    %81 = arith.cmpi ne, %80, %c0_i32_33 : i32
    scf.if %81 {
      %c0_34 = arith.constant 0 : index
      %82 = memref.load %arg9[%c0_34] : memref<3xf32, #tpu.memory_space<smem>>
      %cst_35 = arith.constant 1.562500e-02 : f32
      %83 = arith.mulf %82, %cst_35 : f32
      %c1_36 = arith.constant 1 : index
      %84 = memref.load %arg9[%c1_36] : memref<3xf32, #tpu.memory_space<smem>>
      %c2_37 = arith.constant 2 : index
      %85 = memref.load %arg9[%c2_37] : memref<3xf32, #tpu.memory_space<smem>>
      %86 = arith.divf %84, %85 : f32
      %c0_38 = arith.constant 0 : index
      %c0_39 = arith.constant 0 : index
      %87 = memref.load %arg6[%c0_38, %c0_39] : memref<1x1xf32, #tpu.memory_space<smem>>
      memref.store %83, %arg6[%c0_38, %c0_39] : memref<1x1xf32, #tpu.memory_space<smem>>
      %c0_40 = arith.constant 0 : index
      %c0_41 = arith.constant 0 : index
      %88 = memref.load %arg7[%c0_40, %c0_41] : memref<1x1xf32, #tpu.memory_space<smem>>
      memref.store %86, %arg7[%c0_40, %c0_41] : memref<1x1xf32, #tpu.memory_space<smem>>
      %cst_42 = arith.constant 1.000000e+00 : f32
      %89 = arith.mulf %cst_42, %83 : f32
      %cst_43 = arith.constant 1.000000e+00 : f32
      %90 = arith.mulf %cst_43, %86 : f32
      %91 = arith.addf %89, %90 : f32
      %c0_44 = arith.constant 0 : index
      %c0_45 = arith.constant 0 : index
      %92 = memref.load %arg8[%c0_44, %c0_45] : memref<1x1xf32, #tpu.memory_space<smem>>
      memref.store %91, %arg8[%c0_44, %c0_45] : memref<1x1xf32, #tpu.memory_space<smem>>
    } else {
    }
    return
  }
  func.func @transform_0(%arg0: i32) -> (i32, i32, i32) {
    %c0_i32 = arith.constant 0 : i32
    %c0_i32_0 = arith.constant 0 : i32
    %c0_i32_1 = arith.constant 0 : i32
    return %c0_i32, %arg0, %c0_i32_0 : i32, i32, i32
  }
  func.func @transform_1(%arg0: i32) -> (i32, i32, i32) {
    %c0_i32 = arith.constant 0 : i32
    %c0_i32_0 = arith.constant 0 : i32
    %c0_i32_1 = arith.constant 0 : i32
    return %c0_i32, %arg0, %c0_i32_0 : i32, i32, i32
  }
  func.func @transform_2(%arg0: i32) -> (i32, i32) {
    %c0_i32 = arith.constant 0 : i32
    %c0_i32_0 = arith.constant 0 : i32
    return %arg0, %c0_i32 : i32, i32
  }
  func.func @transform_3(%arg0: i32) -> (i32, i32) {
    %c0_i32 = arith.constant 0 : i32
    %c0_i32_0 = arith.constant 0 : i32
    return %arg0, %c0_i32 : i32, i32
  }
  func.func @transform_4(%arg0: i32) -> (i32, i32) {
    %c0_i32 = arith.constant 0 : i32
    %c0_i32_0 = arith.constant 0 : i32
    %c0_i32_1 = arith.constant 0 : i32
    return %c0_i32, %c0_i32_0 : i32, i32
  }
  func.func @transform_5(%arg0: i32) -> (i32, i32) {
    %c0_i32 = arith.constant 0 : i32
    %c0_i32_0 = arith.constant 0 : i32
    %c0_i32_1 = arith.constant 0 : i32
    return %c0_i32, %c0_i32_0 : i32, i32
  }
  func.func @transform_6(%arg0: i32) -> (i32, i32) {
    %c0_i32 = arith.constant 0 : i32
    %c0_i32_0 = arith.constant 0 : i32
    %c0_i32_1 = arith.constant 0 : i32
    return %c0_i32, %c0_i32_0 : i32, i32
  }
  func.func @transform_7(%arg0: i32) -> (i32, i32) {
    %c0_i32 = arith.constant 0 : i32
    %c0_i32_0 = arith.constant 0 : i32
    %c0_i32_1 = arith.constant 0 : i32
    return %c0_i32, %c0_i32_0 : i32, i32
  }
}

</mosaic_0001>

<llo_original>
// kernel: tpu_custom_call.1
$region0: #{tpu_custom_call.1}
  #allocation0 [shape = 'u32[]', space=smem, size = 0x4, offset = 0x4, fixed_abs, tag = 'smem constant byte address 0x4 - core index']
  #allocation1 [shape = 'u32[72,128]{1,0:T(1,128)}', space=vmem, size = 0x9000, scoped, tag = 'internal scratch']
  #allocation2 [shape = 'f32[3]{0:T(128)}', space=smem, size = 0x200, scoped, tag = 'scratch operand']
  %s0 = inlined_call_operand.vmem [shape: f32[2,8,8], index: 0, kind: input, shape index: {}]
  %s1 = inlined_call_operand.hbm [shape: f32[2,8,8], index: 1, kind: input, shape index: {}]
  %s2 = inlined_call_operand.vmem [shape: f32[8,4], index: 2, kind: input, shape index: {}]
  %s3 = inlined_call_operand.vmem [shape: s32[8,1], index: 3, kind: input, shape index: {}]
  %s4 = inlined_call_operand.vmem [shape: f32[1,4], index: 4, kind: input, shape index: {}]
  %s5 = inlined_call_operand.hbm [shape: f32[1,1], index: 5, kind: output, shape index: {0}]
  %s6 = inlined_call_operand.hbm [shape: f32[1,1], index: 6, kind: output, shape index: {1}]
  %s7 = inlined_call_operand.hbm [shape: f32[1,1], index: 7, kind: output, shape index: {2}]
  %8 = xla_tuple %s5, %s6, %s7
  %s9 = sld [smem:[#allocation0]]
  $region58: #{tpu_custom_call.1} parent=0
    _
  %s11 = ssub.s32 1, %s9
  %s12 = scalar_select 0, %s11, %s9
  $region1: #{tpu_custom_call.1} parent=0
    #allocation3 [shape = 'u8[8192]{0}', space=vmem, size = 0x2000, scoped, tag = 'input window, operand 1, single buffered']
    #allocation4 [shape = 's32[1]{0}', space=sflag, size = 0x4, scoped, tag = 'scoped memory for tpu_custom_call.1']
    #allocation5 [shape = 's32[1]{0}', space=sflag, size = 0x4, scoped, tag = 'scoped memory for tpu_custom_call.1']
    #allocation6 [shape = 'u8[512]{0}', space=smem, size = 0x200, scoped, tag = 'output window, operand 0, single buffered']
    #allocation7 [shape = 'u8[512]{0}', space=smem, size = 0x200, scoped, tag = 'output window, operand 1, single buffered']
    #allocation8 [shape = 's32[1]{0}', space=sflag, size = 0x4, scoped, tag = 'scoped memory for tpu_custom_call.1']
    #allocation9 [shape = 'u8[512]{0}', space=smem, size = 0x200, scoped, tag = 'output window, operand 2, single buffered']
    %13 = vsyncpa [#allocation4], 0
    %14 = vsyncpa [#allocation5], 0
    %15 = vsyncpa [#allocation8], 0
    // Predicated region
    $region2: #{tpu_custom_call.1} parent=1 // pred_check
      _
    $region3: #{tpu_custom_call.1} parent=1 // pred_check_branch
      %17 = sbr.rel (0) target = $region5
    $region4: #{tpu_custom_call.1} parent=1 // pred_region
      _
    $region5: #{tpu_custom_call.1} parent=1 // pred_fallthru
      _
    // Predicated region
    $region6: #{tpu_custom_call.1} parent=1 // pred_check
      _
    $region7: #{tpu_custom_call.1} parent=1 // pred_check_branch
      %19 = sbr.rel (0) target = $region9
    $region8: #{tpu_custom_call.1} parent=1 // pred_region
      %21 = vsyncadd [#allocation4], 0
      %s22 = sshll.u32 %s1, 4
      %s23 = int_to_ptr.hbm [resolvable:$true] %s22
      %s24 = sshll.u32 [#allocation3], 4
      %s25 = int_to_ptr.vmem [resolvable:$true] %s24
      %30 = dma.hbm_to_vmem [thread:$0]  %s23, 256, %s25, [#allocation4], 128, 128, 8
    $region9: #{tpu_custom_call.1} parent=1 // pred_fallthru
      _
    // Predicated region
    $region10: #{tpu_custom_call.1} parent=1 // pred_check
      _
    $region11: #{tpu_custom_call.1} parent=1 // pred_check_branch
      %32 = sbr.rel (0) target = $region13
    $region12: #{tpu_custom_call.1} parent=1 // pred_region
      _
    $region13: #{tpu_custom_call.1} parent=1 // pred_fallthru
      _
    // Predicated region
    $region14: #{tpu_custom_call.1} parent=1 // pred_check
      _
    $region15: #{tpu_custom_call.1} parent=1 // pred_check_branch
      %34 = sbr.rel (0) target = $region17
    $region16: #{tpu_custom_call.1} parent=1 // pred_region
      _
    $region17: #{tpu_custom_call.1} parent=1 // pred_fallthru
      _
    // Predicated region
    $region18: #{tpu_custom_call.1} parent=1 // pred_check
      _
    $region19: #{tpu_custom_call.1} parent=1 // pred_check_branch
      %36 = sbr.rel (0) target = $region21
    $region20: #{tpu_custom_call.1} parent=1 // pred_region
      _
    $region21: #{tpu_custom_call.1} parent=1 // pred_fallthru
      _
    // Predicated region
    $region22: #{tpu_custom_call.1} parent=1 // pred_check
      _
    $region23: #{tpu_custom_call.1} parent=1 // pred_check_branch
      %38 = sbr.rel (0) target = $region25
    $region24: #{tpu_custom_call.1} parent=1 // pred_region
      %40 = dma.done [#allocation4], 256
    $region25: #{tpu_custom_call.1} parent=1 // pred_fallthru
      _
    %p41 = scmp.eq.s32.totalorder 0, 0
    // Predicated region
    $region26: #{tpu_custom_call.1} parent=1 // pred_check
      %p42 = pneg %p41
    $region27: #{tpu_custom_call.1} parent=1 // pred_check_branch
      %44 = sbr.rel (%p42) target = $region29
    $region28: #{tpu_custom_call.1} parent=1 // pred_region
      %s45 = scalar_lea.smem [#allocation2], 0
      %46 = sst [smem:[%s45]] 0.0
      %s47 = scalar_lea.smem [#allocation2], 1
      %48 = sst [smem:[%s47]] 0.0
      %s49 = scalar_lea.smem [#allocation2], 2
      %50 = sst [smem:[%s49]] 0.0
    $region29: #{tpu_custom_call.1} parent=1 // pred_fallthru
      _
    %s51 = smul.u32 0, 8
    %v52 = vlaneseq
    %v53 = vshrl.u32 %v52, 7
    %v54 = vstv %s51
    %v55 = vadd.s32 %v54, %v53
    %vm56 = vcmp.lt.s32.totalorder %v55, 8
    %v57 = vld [vmem:[%s0] sm:$0xff]
    %s58 = scalar_lea.vmem %s0, 8
    %v59 = vld [vmem:[%s58] sm:$0xff]
    %v60 = vld [vmem:[#allocation3] sm:$0xff]
    %s61 = scalar_lea.vmem [#allocation3], 8
    %v62 = vld [vmem:[%s61] sm:$0xff]
    %v63 = vsub.f32 %v57, %v60
    %v64 = vsub.f32 %v59, %v62
    %v65 = vmul.f32 %v63, %v63
    %v66 = vmul.f32 %v64, %v64
    %v67 = vadd.f32 %v65, %v66
    %v68 = vrsqrt.pop %v67
    %v69 = vmul.f32 %v68, %v67
    %v70 = vmul.f32 %v69, %v68
    %v71 = vmul.f32 0.5, %v70
    %v72 = vsub.f32 1.5, %v71
    %v73 = vmul.f32 %v68, %v72
    %v74 = vmul.f32 %v67, %v73
    %vm75 = vcmp.eq.f32.partialorder %v67, inf
    %v76 = vsel %vm75, %v67, %v74
    %vm77 = vcmp.eq.f32.partialorder %v67, 0.0
    %v78 = vand.u32 %v67, 2147483648
    %v79 = vsel %vm77, %v78, %v76
    %v80 = vsel %vm56, 1, 0
    %vm81 = vcmp.eq.s32.totalorder %v80, 1
    %v82 = vsel %vm81, %v79, 0.0
    %vm83 = vcmask 64512
    %v84 = vsel %vm83, %v82, 0.0
    %85 = vadd.xlane.f32.xlu0 %v84
    %v86 = vpop.xlane.xlu0 %85
    %v87 = vrot.slane %v86, 4
    %v88 = vadd.f32 %v86, %v87
    %v89 = vrot.slane %v88, 2
    %v90 = vadd.f32 %v88, %v89
    %v91 = vrot.slane %v90, 1
    %v92 = vadd.f32 %v90, %v91
    %s93 = vtos %v92
    %v94 = vld [vmem:[%s2] sm:$0xff]
    %v95 = vld [vmem:[%s3] sm:$0xff]
    %v96 = vlaneseq
    %v97 = vand.u32 %v96, 127
    %98 = vset.pattern.permute.xlu0 0
    %99 = vperm.xlu0 %98, %v95
    %v100 = vpop.permute.xlu0 %99
    %vm101 = vcmp.eq.s32.totalorder %v97, %v100
    %v102 = vsel %vm101, 1, 0
    %v103 = vcvt.s32.f32 %v102
    %vm104 = vcmask 31744
    %v105 = vsel %vm104, %v94, -inf
    %106 = vmax.xlane.f32.xlu0 %v105
    %v107 = vpop.xlane.xlu0 %106
    %v108 = vsub.f32 %v94, %v107
    %v109 = vmul.f32 %v108, 1.442695
    %v110 = vpow.pop %v109
    %v111 = vsel %vm104, %v110, 0.0
    %112 = vadd.xlane.f32.xlu0 %v111
    %v113 = vpop.xlane.xlu0 %112
    %v114 = vlog2.pop %v113
    %v115 = vmul.f32 %v114, 0.6931472
    %v116 = vadd.f32 %v107, %v115
    %v117 = vmul.f32 %v103, %v94
    %v118 = vsel %vm104, %v117, 0.0
    %119 = vadd.xlane.f32.xlu0 %v118
    %v120 = vpop.xlane.xlu0 %119
    %v121 = vsub.f32 %v116, %v120
    %v122 = vld [vmem:[%s4] sm:$0x1]
    %v123 = vrcp.pop %v122
    %v124 = vmul.f32 %v122, %v123
    %v125 = vsub.f32 1.0, %v124
    %v126 = vmul.f32 %v123, %v125
    %v127 = vadd.f32 %v123, %v126
    %vm128 = vweird.f32 %v122
    %vm129 = vweird.f32 %v123
    %vm130 = vmor %vm128, %vm129
    %v131 = vsel %vm130, %v123, %v127
    %v132 = vand.u32 2147483647, %v122
    %vm133 = vcmp.eq.f32.partialorder %v132, 8.507059e+37
    %v134 = vand.u32 %v122, 2147483648
    %v135 = vor.u32 1.1754944e-38, %v134
    %v136 = vsel %vm133, %v135, %v131
    %v138 = vperm.slane %v136, 0
    %v140 = vmul.f32 %v103, %v138
    %v141 = vsel %vm104, %v140, 0.0
    %142 = vadd.xlane.f32.xlu0 %v141
    %v143 = vpop.xlane.xlu0 %142
    %v144 = vsel %vm56, %v121, 0.0
    %v145 = vsel %vm56, %v143, 0.0
    %v146 = vmul.f32 %v145, %v144
    %vm147 = vcmask 7168
    %v148 = vsel %vm147, %v146, 0.0
    %149 = vadd.xlane.f32.xlu0 %v148
    %v150 = vpop.xlane.xlu0 %149
    %v151 = vrot.slane %v150, 4
    %v152 = vadd.f32 %v150, %v151
    %v153 = vrot.slane %v152, 2
    %v154 = vadd.f32 %v152, %v153
    %v155 = vrot.slane %v154, 1
    %v156 = vadd.f32 %v154, %v155
    %s157 = vtos %v156
    %v158 = vsel %vm147, %v145, 0.0
    %159 = vadd.xlane.f32.xlu0 %v158
    %v160 = vpop.xlane.xlu0 %159
    %v161 = vrot.slane %v160, 4
    %v162 = vadd.f32 %v160, %v161
    %v163 = vrot.slane %v162, 2
    %v164 = vadd.f32 %v162, %v163
    %v165 = vrot.slane %v164, 1
    %v166 = vadd.f32 %v164, %v165
    %s167 = vtos %v166
    %s168 = sld [smem:[#allocation2]]
    %s169 = sadd.f32 %s168, %s93
    %s170 = scalar_lea.smem [#allocation2], 0
    %171 = sst [smem:[%s170]] %s169
    %s172 = sld [smem:[#allocation2 + $0x1]]
    %s173 = sadd.f32 %s172, %s157
    %s174 = scalar_lea.smem [#allocation2], 1
    %175 = sst [smem:[%s174]] %s173
    %s176 = sld [smem:[#allocation2 + $0x2]]
    %s177 = sadd.f32 %s176, %s167
    %s178 = scalar_lea.smem [#allocation2], 2
    %179 = sst [smem:[%s178]] %s177
    // Predicated region
    $region30: #{tpu_custom_call.1} parent=1 // pred_check
      %p180 = pneg %p41
    $region31: #{tpu_custom_call.1} parent=1 // pred_check_branch
      %182 = sbr.rel (%p180) target = $region33
    $region32: #{tpu_custom_call.1} parent=1 // pred_region
      %s183 = sld [smem:[#allocation2]]
      %s184 = smul.f32 %s183, 0.015625
      %s185 = sld [smem:[#allocation2 + $0x1]]
      %s186 = sld [smem:[#allocation2 + $0x2]]
      %v187 = vstv %s186
      %v188 = vrcp.pop %v187
      %v189 = vmul.f32 %v187, %v188
      %v190 = vsub.f32 1.0, %v189
      %v191 = vmul.f32 %v188, %v190
      %v192 = vadd.f32 %v188, %v191
      %vm193 = vweird.f32 %v187
      %vm194 = vweird.f32 %v188
      %vm195 = vmor %vm193, %vm194
      %v196 = vsel %vm195, %v188, %v192
      %v197 = vand.u32 2147483647, %v187
      %vm198 = vcmp.eq.f32.partialorder %v197, 8.507059e+37
      %v199 = vand.u32 %v187, 2147483648
      %v200 = vor.u32 1.1754944e-38, %v199
      %v201 = vsel %vm198, %v200, %v196
      %s202 = vtos %v201
      %s203 = smul.f32 %s185, %s202
      %s204 = scalar_lea.smem [#allocation6], 0
      %205 = sst [smem:[%s204]] %s184
      %s206 = scalar_lea.smem [#allocation7], 0
      %207 = sst [smem:[%s206]] %s203
      %s208 = sadd.f32 %s184, %s203
      %s209 = scalar_lea.smem [#allocation9], 0
      %210 = sst [smem:[%s209]] %s208
    $region33: #{tpu_custom_call.1} parent=1 // pred_fallthru
      _
    // Predicated region
    $region34: #{tpu_custom_call.1} parent=1 // pred_check
      _
    $region35: #{tpu_custom_call.1} parent=1 // pred_check_branch
      %212 = sbr.rel (0) target = $region37
    $region36: #{tpu_custom_call.1} parent=1 // pred_region
      %214 = vsyncadd [#allocation5], 0
      %s216 = sshll.u32 %s5, 4
      %s217 = int_to_ptr.hbm [resolvable:$true] %s216
      %219 = dma.smem_to_hbm [#allocation6], 16, %s217, [#allocation5]
    $region37: #{tpu_custom_call.1} parent=1 // pred_fallthru
      _
    // Predicated region
    $region38: #{tpu_custom_call.1} parent=1 // pred_check
      _
    $region39: #{tpu_custom_call.1} parent=1 // pred_check_branch
      %221 = sbr.rel (0) target = $region41
    $region40: #{tpu_custom_call.1} parent=1 // pred_region
      %223 = vsyncadd [#allocation8], 0
      %s225 = sshll.u32 %s6, 4
      %s226 = int_to_ptr.hbm [resolvable:$true] %s225
      %228 = dma.smem_to_hbm [#allocation7], 16, %s226, [#allocation8]
    $region41: #{tpu_custom_call.1} parent=1 // pred_fallthru
      _
    // Predicated region
    $region42: #{tpu_custom_call.1} parent=1 // pred_check
      _
    $region43: #{tpu_custom_call.1} parent=1 // pred_check_branch
      %230 = sbr.rel (0) target = $region45
    $region44: #{tpu_custom_call.1} parent=1 // pred_region
      %232 = vsyncadd [#allocation8], 0
      %s234 = sshll.u32 %s7, 4
      %s235 = int_to_ptr.hbm [resolvable:$true] %s234
      %237 = dma.smem_to_hbm [#allocation9], 16, %s235, [#allocation8]
    $region45: #{tpu_custom_call.1} parent=1 // pred_fallthru
      _
    // Predicated region
    $region46: #{tpu_custom_call.1} parent=1 // pred_check
      _
    $region47: #{tpu_custom_call.1} parent=1 // pred_check_branch
      %239 = sbr.rel (0) target = $region49
    $region48: #{tpu_custom_call.1} parent=1 // pred_region
      %241 = dma.done [#allocation5], 16
    $region49: #{tpu_custom_call.1} parent=1 // pred_fallthru
      _
    // Predicated region
    $region50: #{tpu_custom_call.1} parent=1 // pred_check
      _
    $region51: #{tpu_custom_call.1} parent=1 // pred_check_branch
      %243 = sbr.rel (0) target = $region53
    $region52: #{tpu_custom_call.1} parent=1 // pred_region
      %245 = dma.done [#allocation8], 16
    $region53: #{tpu_custom_call.1} parent=1 // pred_fallthru
      _
    // Predicated region
    $region54: #{tpu_custom_call.1} parent=1 // pred_check
      _
    $region55: #{tpu_custom_call.1} parent=1 // pred_check_branch
      %247 = sbr.rel (0) target = $region57
    $region56: #{tpu_custom_call.1} parent=1 // pred_region
      %249 = dma.done [#allocation8], 16
    $region57: #{tpu_custom_call.1} parent=1 // pred_fallthru
      _
    %250 = sfence
    %251 = vsyncpa [#allocation4], 1
    %252 = vsyncpa [#allocation5], 1
    %253 = vsyncpa [#allocation8], 1

</llo_original>
